<compile_context>
chip_gen: v7x
topology: tpu7x:2x2x1
jax: 0.10.0
libtpu: 0.0.40
codegen_flags: <defaults>
</compile_context>

<pallas_src>
import jax
import jax.numpy as jnp
from jax import lax
from jax.experimental import pallas as pl
from jax.experimental.pallas import tpu as pltpu


def _round_up(v, m):
    return ((v + m - 1) // m) * m


def _padded_bytes(shape, itemsize):
    """Approximate VMEM footprint of a tile (last dim -> 128, 2nd-last -> 8)."""
    s = list(shape)
    if len(s) >= 1:
        s[-1] = _round_up(s[-1], 128)
    if len(s) >= 2:
        s[-2] = _round_up(s[-2], 8)
    total = 1
    for d in s:
        total *= int(d)
    return total * itemsize


def _vmem_capacity_bytes():
    try:
        return int(pltpu.get_tpu_info().vmem_capacity_bytes)
    except Exception:
        return 64 << 20  # conservative fallback: v7x per-TensorCore VMEM


def gtn_encoder_kernel(adj_ref, x_ref, w1_ref, w2_ref, out_ref):
    # adj_ref: [G, N, N] bf16, x_ref: [G, N, F] bf16,
    # w1_ref: [F, H] bf16, w2_ref: [H, O] bf16, out_ref: [G, N, O] f32.
    gb = adj_ref.shape[0]

    # Load weights once per grid step, outside the per-graph loop.
    w1 = w1_ref[...]
    w2 = w2_ref[...]

    def one_graph(g, carry):
        adj = adj_ref[g]          # [N, N] bf16
        x = x_ref[g]              # [N, F] bf16

        # --- GTLayer 1: (A @ x) @ W1  (in_feat <= hidden: contract small dim) ---
        ax = jnp.dot(adj, x, preferred_element_type=jnp.float32)          # [N, F] f32
        h = jnp.dot(ax.astype(jnp.bfloat16), w1,
                    preferred_element_type=jnp.float32)                   # [N, H] f32

        # --- ReLU; Dropout(p=0.0) is the identity ---
        h = jnp.maximum(h, 0.0)

        # --- GTLayer 2, reordered: A @ (h @ W2)  (out_feat <= hidden) ---
        hw2 = jnp.dot(h.astype(jnp.bfloat16), w2,
                      preferred_element_type=jnp.float32)                 # [N, O] f32
        out = jnp.dot(adj, hw2.astype(jnp.bfloat16),
                      preferred_element_type=jnp.float32)                 # [N, O] f32

        out_ref[g] = out.astype(out_ref.dtype)
        return carry

    # fori_loop (not a Python for) bounds the live range of each graph's f32
    # intermediates; unroll small trip-counts for LLO scheduler visibility.
    lax.fori_loop(0, gb, one_graph, 0, unroll=(gb <= 8))


def _pick_graphs_per_block(b, n, f, h, o, vmem_cap, requested=None):
    if requested is not None:
        assert b % requested == 0, "batch must be divisible by graphs_per_block"
        return requested

    budget = int(vmem_cap * 0.5)  # leave headroom for compiler scratch / spills
    weights = 2 * (_padded_bytes((f, h), 2) + _padded_bytes((h, o), 2))
    per_graph_tmp = (_padded_bytes((n, f), 4) + _padded_bytes((n, h), 4)
                     + 2 * _padded_bytes((n, o), 4))          # one graph's f32 temps
    # Double-buffered pipelined blocks: bf16 inputs, f32 output.
    per_graph_io = 2 * (_padded_bytes((1, n, n), 2)
                        + _padded_bytes((1, n, f), 2)
                        + _padded_bytes((1, n, o), 4))

    avail = max(budget - weights - per_graph_tmp, per_graph_io)
    gb_cap = max(1, avail // per_graph_io)
    # Keep >= 4 grid steps when batch allows (>= 2 steps per TensorCore on v7x
    # under dimension_semantics=("parallel",) so the pipeline stays overlapped).
    gb_cap = min(gb_cap, max(1, b // 4))

    gb = 1
    for d in range(1, b + 1):
        if b % d == 0 and d <= gb_cap:
            gb = d
    return gb


def gtn_encoder(x, adjacency, w1, w2, *, graphs_per_block=None):
    """Batched GTNEncoder forward. Accepts single-graph ([N,F]) or batched
    ([B,N,F]) inputs; weights are shared across the batch (as in the module)."""
    single = x.ndim == 2
    if single:
        x = x[None]
        adjacency = adjacency[None]

    b, n_nodes, in_feat = x.shape
    hidden = w1.shape[1]
    out_feat = w2.shape[1]
    assert adjacency.shape == (b, n_nodes, n_nodes)
    assert w1.shape == (in_feat, hidden)
    assert w2.shape == (hidden, out_feat)

    # Wrapper-side bf16 casts: halves DMA bytes and VMEM block footprint,
    # removes per-step in-kernel casts. Accumulation remains f32 in-kernel.
    adj_bf = adjacency.astype(jnp.bfloat16)
    x_bf = x.astype(jnp.bfloat16)
    w1_bf = w1.astype(jnp.bfloat16)
    w2_bf = w2.astype(jnp.bfloat16)

    vmem_cap = _vmem_capacity_bytes()
    gb = _pick_graphs_per_block(b, n_nodes, in_feat, hidden, out_feat,
                                vmem_cap, graphs_per_block)
    grid = (b // gb,)

    # Explicit scoped-VMEM limit so larger double-buffered blocks are accepted
    # on all generations (defaults: 16 MiB v5e, 32 MiB v6e/v7x).
    weights_b = 2 * (_padded_bytes((in_feat, hidden), 2)
                     + _padded_bytes((hidden, out_feat), 2))
    per_graph_io = 2 * (_padded_bytes((1, n_nodes, n_nodes), 2)
                        + _padded_bytes((1, n_nodes, in_feat), 2)
                        + _padded_bytes((1, n_nodes, out_feat), 4))
    per_graph_tmp = (_padded_bytes((n_nodes, in_feat), 4)
                     + _padded_bytes((n_nodes, hidden), 4)
                     + 2 * _padded_bytes((n_nodes, out_feat), 4))
    needed = weights_b + gb * per_graph_io + per_graph_tmp
    vmem_limit = int(min(vmem_cap, max(2 * needed, 16 << 20)))

    out = pl.pallas_call(
        gtn_encoder_kernel,
        out_shape=jax.ShapeDtypeStruct((b, n_nodes, out_feat), jnp.float32),
        grid_spec=pltpu.PrefetchScalarGridSpec(
            num_scalar_prefetch=0,
            grid=grid,
            in_specs=[
                pl.BlockSpec((gb, n_nodes, n_nodes), lambda i: (i, 0, 0)),
                pl.BlockSpec((gb, n_nodes, in_feat), lambda i: (i, 0, 0)),
                # Weights: constant index_map -> stay VMEM resident across steps.
                pl.BlockSpec((in_feat, hidden), lambda i: (0, 0)),
                pl.BlockSpec((hidden, out_feat), lambda i: (0, 0)),
            ],
            # Unpadded output block: HBM writeback carries only the real
            # out_feat columns; no wrapper-side slice needed.
            out_specs=pl.BlockSpec((gb, n_nodes, out_feat), lambda i: (i, 0, 0)),
        ),
        compiler_params=pltpu.CompilerParams(
            dimension_semantics=("parallel",),
            vmem_limit_bytes=vmem_limit),
    )(adj_bf, x_bf, w1_bf, w2_bf)

    return out[0] if single else out


def xavier_uniform_gt(key, num_edge, in_channels, out_channels):
    # Matches torch.nn.init.xavier_uniform_ on the (num_edge, in, out) weight:
    # fan_in = in*out (size(1) * receptive_field), fan_out = num_edge*out.
    fan_in = in_channels * out_channels
    fan_out = num_edge * out_channels
    limit = float(jnp.sqrt(6.0 / (fan_in + fan_out)))
    w = jax.random.uniform(key, (num_edge, in_channels, out_channels),
                           jnp.float32, -limit, limit)
    return w[0]  # num_edge = 1 -> the single slice the forward pass uses


def gtn_encoder_ref_f32(x, adjacency, w1, w2):
    # Pure-f32 reference with the exact PyTorch contraction order.
    ax = jnp.einsum('bij,bjf->bif', adjacency, x)
    h = jnp.maximum(jnp.einsum('bif,fh->bih', ax, w1), 0.0)
    ah = jnp.einsum('bij,bjh->bih', adjacency, h)
    return jnp.einsum('bih,ho->bio', ah, w2)


def gtn_encoder_ref_bf16(x, adjacency, w1, w2):
    # Mirrors the kernel's bf16-input / f32-accumulate math and reordering.
    adj = adjacency.astype(jnp.bfloat16)
    xb = x.astype(jnp.bfloat16)
    w1b = w1.astype(jnp.bfloat16)
    w2b = w2.astype(jnp.bfloat16)
    ax = jnp.einsum('bij,bjf->bif', adj, xb, preferred_element_type=jnp.float32)
    h = jnp.einsum('bif,fh->bih', ax.astype(jnp.bfloat16), w1b,
                   preferred_element_type=jnp.float32)
    h = jnp.maximum(h, 0.0)
    hw2 = jnp.einsum('bih,ho->bio', h.astype(jnp.bfloat16), w2b,
                     preferred_element_type=jnp.float32)
    return jnp.einsum('bij,bjo->bio', adj, hw2.astype(jnp.bfloat16),
                      preferred_element_type=jnp.float32)


if __name__ == "__main__":
    key = jax.random.PRNGKey(0)
    k_x, k_a, k_w1, k_w2 = jax.random.split(key, 4)

    batch = 8
    n_nodes = 16
    in_features = 16
    hidden_features = 32
    out_features = 8

    x = jax.random.normal(k_x, (batch, n_nodes, in_features), jnp.float32)
    adjacency = jax.random.uniform(k_a, (batch, n_nodes, n_nodes), jnp.float32)

    # Deterministic parameter init matching torch xavier_uniform_ on the
    # (num_edge=1, in, out) weight tensor; shared across the batch of graphs.
    w1 = xavier_uniform_gt(k_w1, 1, in_features, hidden_features)
    w2 = xavier_uniform_gt(k_w2, 1, hidden_features, out_features)

    out = gtn_encoder(x, adjacency, w1, w2)
    out = jax.block_until_ready(out)
    assert out.shape == (batch, n_nodes, out_features)

    # Tight check vs a reference that mirrors the kernel's bf16/f32 math.
    ref_bf16 = gtn_encoder_ref_bf16(x, adjacency, w1, w2)
    assert jnp.allclose(out, ref_bf16, atol=1e-2, rtol=1e-2)

    # Loose check vs the pure-f32 PyTorch-order reference (bf16 rounding only).
    ref_f32 = gtn_encoder_ref_f32(x, adjacency, w1, w2)
    assert jnp.allclose(out, ref_f32, atol=0.5, rtol=0.1)

    print("KERNEL_OK")
</pallas_src>

<mosaic_0001>
module attributes {stable_mosaic.version = 11 : i64} {
  func.func @gtn_encoder_kernel(%arg0: i32, %arg1: memref<2x16x16xbf16, #tpu.memory_space<vmem>>, %arg2: memref<2x16x16xbf16, #tpu.memory_space<vmem>>, %arg3: memref<16x32xbf16, #tpu.memory_space<vmem>>, %arg4: memref<32x8xbf16, #tpu.memory_space<vmem>>, %arg5: memref<2x16x8xf32, #tpu.memory_space<vmem>>) attributes {dimension_semantics = [#tpu.dimension_semantics<parallel>], iteration_bounds = array<i64: 4>, scalar_prefetch = 0 : i64, scratch_operands = 0 : i64, tpu.core_type = #tpu.core_type<tc>, window_params = [{transform_indices = @transform_0, window_bounds = array<i64: 2, 16, 16>}, {transform_indices = @transform_1, window_bounds = array<i64: 2, 16, 16>}, {pipeline_mode = #tpu.pipeline_mode<synchronous>, transform_indices = @transform_2, window_bounds = array<i64: 16, 32>}, {pipeline_mode = #tpu.pipeline_mode<synchronous>, transform_indices = @transform_3, window_bounds = array<i64: 32, 8>}, {transform_indices = @transform_4, window_bounds = array<i64: 2, 16, 8>}]} {
    %c0 = arith.constant 0 : index
    %c0_0 = arith.constant 0 : index
    %0 = vector.load %arg3[%c0, %c0_0] : memref<16x32xbf16, #tpu.memory_space<vmem>>, vector<16x32xbf16>
    %c0_1 = arith.constant 0 : index
    %c0_2 = arith.constant 0 : index
    %1 = vector.load %arg4[%c0_1, %c0_2] : memref<32x8xbf16, #tpu.memory_space<vmem>>, vector<32x8xbf16>
    %c0_i32 = arith.constant 0 : i32
    %2 = arith.index_cast %c0_i32 : i32 to index
    %c0_3 = arith.constant 0 : index
    %c0_4 = arith.constant 0 : index
    %3 = vector.load %arg1[%2, %c0_3, %c0_4] : memref<2x16x16xbf16, #tpu.memory_space<vmem>>, vector<1x16x16xbf16>
    %4 = vector.shape_cast %3 : vector<1x16x16xbf16> to vector<16x16xbf16>
    %5 = arith.index_cast %c0_i32 : i32 to index
    %c0_5 = arith.constant 0 : index
    %c0_6 = arith.constant 0 : index
    %6 = vector.load %arg2[%5, %c0_5, %c0_6] : memref<2x16x16xbf16, #tpu.memory_space<vmem>>, vector<1x16x16xbf16>
    %7 = vector.shape_cast %6 : vector<1x16x16xbf16> to vector<16x16xbf16>
    %cst = arith.constant dense<0.000000e+00> : vector<16x16xf32>
    %8 = tpu.matmul %4, %7, %cst {dimension_numbers = #tpu.dot_dimension_numbers<[1], [0], [0], [1], [0, 0, 1, 1], [], []>} : vector<16x16xbf16>, vector<16x16xbf16>, vector<16x16xf32> -> vector<16x16xf32>
    %9 = arith.truncf %8 : vector<16x16xf32> to vector<16x16xbf16>
    %cst_7 = arith.constant dense<0.000000e+00> : vector<16x32xf32>
    %10 = tpu.matmul %9, %0, %cst_7 {dimension_numbers = #tpu.dot_dimension_numbers<[1], [0], [0], [1], [0, 0, 1, 1], [], []>} : vector<16x16xbf16>, vector<16x32xbf16>, vector<16x32xf32> -> vector<16x32xf32>
    %cst_8 = arith.constant 0.000000e+00 : f32
    %11 = vector.broadcast %cst_8 : f32 to vector<16x32xf32>
    %12 = arith.maximumf %10, %11 : vector<16x32xf32>
    %13 = arith.truncf %12 : vector<16x32xf32> to vector<16x32xbf16>
    %cst_9 = arith.constant dense<0.000000e+00> : vector<16x8xf32>
    %14 = tpu.matmul %13, %1, %cst_9 {dimension_numbers = #tpu.dot_dimension_numbers<[1], [0], [0], [1], [0, 0, 1, 1], [], []>} : vector<16x32xbf16>, vector<32x8xbf16>, vector<16x8xf32> -> vector<16x8xf32>
    %15 = arith.truncf %14 : vector<16x8xf32> to vector<16x8xbf16>
    %cst_10 = arith.constant dense<0.000000e+00> : vector<16x8xf32>
    %16 = tpu.matmul %4, %15, %cst_10 {dimension_numbers = #tpu.dot_dimension_numbers<[1], [0], [0], [1], [0, 0, 1, 1], [], []>} : vector<16x16xbf16>, vector<16x8xbf16>, vector<16x8xf32> -> vector<16x8xf32>
    %17 = arith.index_cast %c0_i32 : i32 to index
    %c0_11 = arith.constant 0 : index
    %c0_12 = arith.constant 0 : index
    %18 = vector.load %arg5[%17, %c0_11, %c0_12] : memref<2x16x8xf32, #tpu.memory_space<vmem>>, vector<1x16x8xf32>
    %19 = vector.shape_cast %18 : vector<1x16x8xf32> to vector<16x8xf32>
    %20 = vector.shape_cast %16 : vector<16x8xf32> to vector<1x16x8xf32>
    tpu.vector_store %arg5[%17, %c0_11, %c0_12], %20 {strides = array<i32>} : memref<2x16x8xf32, #tpu.memory_space<vmem>>, vector<1x16x8xf32>,
    %c1_i32 = arith.constant 1 : i32
    %21 = arith.index_cast %c1_i32 : i32 to index
    %c0_13 = arith.constant 0 : index
    %c0_14 = arith.constant 0 : index
    %22 = vector.load %arg1[%21, %c0_13, %c0_14] : memref<2x16x16xbf16, #tpu.memory_space<vmem>>, vector<1x16x16xbf16>
    %23 = vector.shape_cast %22 : vector<1x16x16xbf16> to vector<16x16xbf16>
    %24 = arith.index_cast %c1_i32 : i32 to index
    %c0_15 = arith.constant 0 : index
    %c0_16 = arith.constant 0 : index
    %25 = vector.load %arg2[%24, %c0_15, %c0_16] : memref<2x16x16xbf16, #tpu.memory_space<vmem>>, vector<1x16x16xbf16>
    %26 = vector.shape_cast %25 : vector<1x16x16xbf16> to vector<16x16xbf16>
    %cst_17 = arith.constant dense<0.000000e+00> : vector<16x16xf32>
    %27 = tpu.matmul %23, %26, %cst_17 {dimension_numbers = #tpu.dot_dimension_numbers<[1], [0], [0], [1], [0, 0, 1, 1], [], []>} : vector<16x16xbf16>, vector<16x16xbf16>, vector<16x16xf32> -> vector<16x16xf32>
    %28 = arith.truncf %27 : vector<16x16xf32> to vector<16x16xbf16>
    %cst_18 = arith.constant dense<0.000000e+00> : vector<16x32xf32>
    %29 = tpu.matmul %28, %0, %cst_18 {dimension_numbers = #tpu.dot_dimension_numbers<[1], [0], [0], [1], [0, 0, 1, 1], [], []>} : vector<16x16xbf16>, vector<16x32xbf16>, vector<16x32xf32> -> vector<16x32xf32>
    %cst_19 = arith.constant 0.000000e+00 : f32
    %30 = vector.broadcast %cst_19 : f32 to vector<16x32xf32>
    %31 = arith.maximumf %29, %30 : vector<16x32xf32>
    %32 = arith.truncf %31 : vector<16x32xf32> to vector<16x32xbf16>
    %cst_20 = arith.constant dense<0.000000e+00> : vector<16x8xf32>
    %33 = tpu.matmul %32, %1, %cst_20 {dimension_numbers = #tpu.dot_dimension_numbers<[1], [0], [0], [1], [0, 0, 1, 1], [], []>} : vector<16x32xbf16>, vector<32x8xbf16>, vector<16x8xf32> -> vector<16x8xf32>
    %34 = arith.truncf %33 : vector<16x8xf32> to vector<16x8xbf16>
    %cst_21 = arith.constant dense<0.000000e+00> : vector<16x8xf32>
    %35 = tpu.matmul %23, %34, %cst_21 {dimension_numbers = #tpu.dot_dimension_numbers<[1], [0], [0], [1], [0, 0, 1, 1], [], []>} : vector<16x16xbf16>, vector<16x8xbf16>, vector<16x8xf32> -> vector<16x8xf32>
    %36 = arith.index_cast %c1_i32 : i32 to index
    %c0_22 = arith.constant 0 : index
    %c0_23 = arith.constant 0 : index
    %37 = vector.load %arg5[%36, %c0_22, %c0_23] : memref<2x16x8xf32, #tpu.memory_space<vmem>>, vector<1x16x8xf32>
    %38 = vector.shape_cast %37 : vector<1x16x8xf32> to vector<16x8xf32>
    %39 = vector.shape_cast %35 : vector<16x8xf32> to vector<1x16x8xf32>
    tpu.vector_store %arg5[%36, %c0_22, %c0_23], %39 {strides = array<i32>} : memref<2x16x8xf32, #tpu.memory_space<vmem>>, vector<1x16x8xf32>,
    %c2_i32 = arith.constant 2 : i32
    return
  }
  func.func @transform_0(%arg0: i32) -> (i32, i32, i32) {
    %c0_i32 = arith.constant 0 : i32
    %c0_i32_0 = arith.constant 0 : i32
    %c0_i32_1 = arith.constant 0 : i32
    return %arg0, %c0_i32, %c0_i32_0 : i32, i32, i32
  }
  func.func @transform_1(%arg0: i32) -> (i32, i32, i32) {
    %c0_i32 = arith.constant 0 : i32
    %c0_i32_0 = arith.constant 0 : i32
    %c0_i32_1 = arith.constant 0 : i32
    return %arg0, %c0_i32, %c0_i32_0 : i32, i32, i32
  }
  func.func @transform_2(%arg0: i32) -> (i32, i32) {
    %c0_i32 = arith.constant 0 : i32
    %c0_i32_0 = arith.constant 0 : i32
    %c0_i32_1 = arith.constant 0 : i32
    return %c0_i32, %c0_i32_0 : i32, i32
  }
  func.func @transform_3(%arg0: i32) -> (i32, i32) {
    %c0_i32 = arith.constant 0 : i32
    %c0_i32_0 = arith.constant 0 : i32
    %c0_i32_1 = arith.constant 0 : i32
    return %c0_i32, %c0_i32_0 : i32, i32
  }
  func.func @transform_4(%arg0: i32) -> (i32, i32, i32) {
    %c0_i32 = arith.constant 0 : i32
    %c0_i32_0 = arith.constant 0 : i32
    %c0_i32_1 = arith.constant 0 : i32
    return %arg0, %c0_i32, %c0_i32_0 : i32, i32, i32
  }
}

</mosaic_0001>

<llo_original>
// kernel: tpu_custom_call.1
$region0: #{tpu_custom_call.1}
  #allocation0 [shape = 'u32[]', space=smem, size = 0x4, offset = 0x4, fixed_abs, tag = 'smem constant byte address 0x4 - core index']
  #allocation1 [shape = 'u32[144,128]{1,0:T(1,128)}', space=vmem, size = 0x12000, scoped, tag = 'internal scratch']
  %s0 = inlined_call_operand.hbm [shape: bf16[8,16,16], index: 0, kind: input, shape index: {}]
  %s1 = inlined_call_operand.hbm [shape: bf16[8,16,16], index: 1, kind: input, shape index: {}]
  %s2 = inlined_call_operand.vmem [shape: bf16[16,32], index: 2, kind: input, shape index: {}]
  %s3 = inlined_call_operand.vmem [shape: bf16[32,8], index: 3, kind: input, shape index: {}]
  %s4 = inlined_call_operand.vmem [shape: f32[8,16,8], index: 4, kind: output, shape index: {}]
  %s5 = sld [smem:[#allocation0]]
  $region57: #{tpu_custom_call.1} parent=0
    _
  %s7 = ssub.s32 1, %s5
  %s8 = scalar_select 0, %s7, %s5
  $region1: #{tpu_custom_call.1} parent=0
    #allocation2 [shape = 'u8[16384]{0}', space=vmem, size = 0x4000, scoped, tag = 'input window, operand 0']
    #allocation3 [shape = 's32[2]{0}', space=sflag, size = 0x8, scoped, tag = 'scoped memory for tpu_custom_call.1']
    #allocation4 [shape = 'u8[16384]{0}', space=vmem, size = 0x4000, scoped, tag = 'input window, operand 1']
    #allocation5 [shape = 's32[2]{0}', space=sflag, size = 0x8, scoped, tag = 'scoped memory for tpu_custom_call.1']
    %9 = vsyncpa [#allocation3], 0
    %s10 = scalar_lea.sflag [#allocation3], 1
    %11 = vsyncpa %s10, 0
    %12 = vsyncpa [#allocation5], 0
    %s13 = scalar_lea.sflag [#allocation5], 1
    %14 = vsyncpa %s13, 0
    loop: start=0, step=1, limit=6
    $region2: #{tpu_custom_call.1} parent=1 // loop_pre_header
      _
    $region3: #{tpu_custom_call.1} parent=1 // loop_header
      %s16 = sphi 0, %s20
      %p17 = scmp.ge.s32.totalorder %s16, 6
      %s26 = sphi 0, %s28
      %s29 = sphi 0, %s26
      %s30 = sphi 0, %s29
      %s46 = sphi 0, %s30
      %s52 = sphi 0, %s54
      %s55 = sphi 0, %s52
      %s56 = sphi 0, %s55
      %s72 = sphi 0, %s56
      %s76 = sphi 0, %s76
      %s78 = sphi 0, %s76
      %s79 = sphi 0, %s78
      %s93 = sphi 0, %s79
      %s97 = sphi 0, %s97
      %s99 = sphi 0, %s97
      %s100 = sphi 0, %s99
      %s114 = sphi 0, %s100
      %s120 = sphi 0, %s122
      %s123 = sphi 0, %s120
      %s124 = sphi 0, %s123
      %s140 = sphi 0, %s124
    $region4: #{tpu_custom_call.1} parent=1 // loop_header_branch
      %19 = sbr.rel (%p17) target = $region8
    $region5: #{tpu_custom_call.1} parent=1 // loop_body
      %s21 = ssub.s32 %s16, 1
      %s22 = ssub.s32 %s16, 2
      %s23 = sadd.s32 %s16, 1
      %s24 = ssub.s32 %s16, %s23
      %p25 = scmp.eq.s32.totalorder %s24, 0
      %s27 = sadd.s32 %s26, 1
      %s28 = scalar_select %p25, %s26, %s27
      %p31 = pneg %p25
      %p32 = scmp.eq.s32.totalorder %s16, 3
      %p33 = por %p31, %p32
      %p34 = scmp.ne.s32.totalorder %s26, %s29
      %p35 = scmp.eq.s32.totalorder %s16, 0
      %p36 = por %p34, %p35
      %p37 = scmp.ne.s32.totalorder %s26, %s29
      %p38 = scmp.eq.s32.totalorder %s21, 3
      %p39 = por %p37, %p38
      %p40 = scmp.ne.s32.totalorder %s29, %s30
      %p41 = scmp.eq.s32.totalorder %s21, 0
      %p42 = por %p40, %p41
      %p43 = scmp.ne.s32.totalorder %s29, %s30
      %p44 = scmp.eq.s32.totalorder %s22, 3
      %p45 = por %p43, %p44
      %p47 = scmp.ne.s32.totalorder %s30, %s46
      %p48 = scmp.eq.s32.totalorder %s22, 0
      %p49 = por %p47, %p48
      %s50 = ssub.s32 %s16, %s23
      %p51 = scmp.eq.s32.totalorder %s50, 0
      %s53 = sadd.s32 %s52, 1
      %s54 = scalar_select %p51, %s52, %s53
      %p57 = pneg %p51
      %p58 = scmp.eq.s32.totalorder %s16, 3
      %p59 = por %p57, %p58
      %p60 = scmp.ne.s32.totalorder %s52, %s55
      %p61 = scmp.eq.s32.totalorder %s16, 0
      %p62 = por %p60, %p61
      %p63 = scmp.ne.s32.totalorder %s52, %s55
      %p64 = scmp.eq.s32.totalorder %s21, 3
      %p65 = por %p63, %p64
      %p66 = scmp.ne.s32.totalorder %s55, %s56
      %p67 = scmp.eq.s32.totalorder %s21, 0
      %p68 = por %p66, %p67
      %p69 = scmp.ne.s32.totalorder %s55, %s56
      %p70 = scmp.eq.s32.totalorder %s22, 3
      %p71 = por %p69, %p70
      %p73 = scmp.ne.s32.totalorder %s56, %s72
      %p74 = scmp.eq.s32.totalorder %s22, 0
      %p75 = por %p73, %p74
      %s77 = sadd.s32 %s76, 1
      %p80 = scmp.eq.s32.totalorder %s16, 3
      %p81 = scmp.ne.s32.totalorder %s76, %s78
      %p82 = scmp.eq.s32.totalorder %s16, 0
      %p83 = por %p81, %p82
      %p84 = scmp.ne.s32.totalorder %s76, %s78
      %p85 = scmp.eq.s32.totalorder %s21, 3
      %p86 = por %p84, %p85
      %p87 = scmp.ne.s32.totalorder %s78, %s79
      %p88 = scmp.eq.s32.totalorder %s21, 0
      %p89 = por %p87, %p88
      %p90 = scmp.ne.s32.totalorder %s78, %s79
      %p91 = scmp.eq.s32.totalorder %s22, 3
      %p92 = por %p90, %p91
      %p94 = scmp.ne.s32.totalorder %s79, %s93
      %p95 = scmp.eq.s32.totalorder %s22, 0
      %p96 = por %p94, %p95
      %s98 = sadd.s32 %s97, 1
      %p101 = scmp.eq.s32.totalorder %s16, 3
      %p102 = scmp.ne.s32.totalorder %s97, %s99
      %p103 = scmp.eq.s32.totalorder %s16, 0
      %p104 = por %p102, %p103
      %p105 = scmp.ne.s32.totalorder %s97, %s99
      %p106 = scmp.eq.s32.totalorder %s21, 3
      %p107 = por %p105, %p106
      %p108 = scmp.ne.s32.totalorder %s99, %s100
      %p109 = scmp.eq.s32.totalorder %s21, 0
      %p110 = por %p108, %p109
      %p111 = scmp.ne.s32.totalorder %s99, %s100
      %p112 = scmp.eq.s32.totalorder %s22, 3
      %p113 = por %p111, %p112
      %p115 = scmp.ne.s32.totalorder %s100, %s114
      %p116 = scmp.eq.s32.totalorder %s22, 0
      %p117 = por %p115, %p116
      %s118 = ssub.s32 %s16, %s23
      %p119 = scmp.eq.s32.totalorder %s118, 0
      %s121 = sadd.s32 %s120, 1
      %s122 = scalar_select %p119, %s120, %s121
      %p125 = pneg %p119
      %p126 = scmp.eq.s32.totalorder %s16, 3
      %p127 = por %p125, %p126
      %p128 = scmp.ne.s32.totalorder %s120, %s123
      %p129 = scmp.eq.s32.totalorder %s16, 0
      %p130 = por %p128, %p129
      %p131 = scmp.ne.s32.totalorder %s120, %s123
      %p132 = scmp.eq.s32.totalorder %s21, 3
      %p133 = por %p131, %p132
      %p134 = scmp.ne.s32.totalorder %s123, %s124
      %p135 = scmp.eq.s32.totalorder %s21, 0
      %p136 = por %p134, %p135
      %p137 = scmp.ne.s32.totalorder %s123, %s124
      %p138 = scmp.eq.s32.totalorder %s22, 3
      %p139 = por %p137, %p138
      %p141 = scmp.ne.s32.totalorder %s124, %s140
      %p142 = scmp.eq.s32.totalorder %s22, 0
      %p143 = por %p141, %p142
      %p144 = scmp.le.s32.totalorder 1, %s16
      %p145 = scmp.lt.s32.totalorder %s16, 5
      %p146 = pnand %p144, %p145
      %p147 = pneg %p146
      // Predicated region
      $region9: #{tpu_custom_call.1} parent=5 // pred_check
        _
      $region10: #{tpu_custom_call.1} parent=5 // pred_check_branch
        %149 = sbr.rel (%p146) target = $region12
      $region11: #{tpu_custom_call.1} parent=5 // pred_region
        %s150 = ssub.s32 %s16, 1
        // Predicated region
        $region13: #{tpu_custom_call.1} parent=11 // pred_check
          %p151 = pneg %p89
        $region14: #{tpu_custom_call.1} parent=11 // pred_check_branch
          %153 = sbr.rel (%p151) target = $region16
        $region15: #{tpu_custom_call.1} parent=11 // pred_region
          _
        $region16: #{tpu_custom_call.1} parent=11 // pred_fallthru
          _
        // Predicated region
        $region17: #{tpu_custom_call.1} parent=11 // pred_check
          %p154 = pneg %p110
        $region18: #{tpu_custom_call.1} parent=11 // pred_check_branch
          %156 = sbr.rel (%p154) target = $region20
        $region19: #{tpu_custom_call.1} parent=11 // pred_region
          _
        $region20: #{tpu_custom_call.1} parent=11 // pred_fallthru
          _
      $region12: #{tpu_custom_call.1} parent=5 // pred_fallthru
        _
      %p157 = scmp.lt.s32.totalorder %s16, 4
      // Predicated region
      $region21: #{tpu_custom_call.1} parent=5 // pred_check
        %p158 = pneg %p157
      $region22: #{tpu_custom_call.1} parent=5 // pred_check_branch
        %160 = sbr.rel (%p158) target = $region24
      $region23: #{tpu_custom_call.1} parent=5 // pred_region
        // Predicated region
        $region25: #{tpu_custom_call.1} parent=23 // pred_check
          %p161 = pneg %p36
        $region26: #{tpu_custom_call.1} parent=23 // pred_check_branch
          %163 = sbr.rel (%p161) target = $region28
        $region27: #{tpu_custom_call.1} parent=23 // pred_region
          %s164 = sand.u32 %s26, 1
          %s165 = scalar_lea.sflag [#allocation3], %s164
          %s166 = sand.u32 %s26, 1
          %s167 = smul.addr %s166, 16
          %s168 = scalar_lea.vmem [#allocation2], %s167
          %s169 = smul.u32 2, %s16
          %s171 = ssub.s32 256, 256
          %172 = vsyncadd %s165, %s171
          %s173 = smul.addr %s169, 2
          %s174 = smul.addr %s173, 64
          %s175 = scalar_lea.hbm %s0, %s174
          %s176 = sshll.u32 %s168, 4
          %s177 = int_to_ptr.vmem [resolvable:$true] %s176
          %182 = dma.hbm_to_vmem [thread:$0]  %s175, 256, %s177, %s165, 64, 64, 4
        $region28: #{tpu_custom_call.1} parent=23 // pred_fallthru
          _
        // Predicated region
        $region29: #{tpu_custom_call.1} parent=23 // pred_check
          %p183 = pneg %p62
        $region30: #{tpu_custom_call.1} parent=23 // pred_check_branch
          %185 = sbr.rel (%p183) target = $region32
        $region31: #{tpu_custom_call.1} parent=23 // pred_region
          %s186 = sand.u32 %s52, 1
          %s187 = scalar_lea.sflag [#allocation5], %s186
          %s188 = sand.u32 %s52, 1
          %s189 = smul.addr %s188, 16
          %s190 = scalar_lea.vmem [#allocation4], %s189
          %s191 = smul.u32 2, %s16
          %s193 = ssub.s32 256, 256
          %194 = vsyncadd %s187, %s193
          %s195 = smul.addr %s191, 2
          %s196 = smul.addr %s195, 64
          %s197 = scalar_lea.hbm %s1, %s196
          %s198 = sshll.u32 %s190, 4
          %s199 = int_to_ptr.vmem [resolvable:$true] %s198
          %204 = dma.hbm_to_vmem [thread:$0]  %s197, 256, %s199, %s187, 64, 64, 4
        $region32: #{tpu_custom_call.1} parent=23 // pred_fallthru
          _
      $region24: #{tpu_custom_call.1} parent=5 // pred_fallthru
        _
      %p205 = scmp.le.s32.totalorder 1, %s16
      %p206 = scmp.lt.s32.totalorder %s16, 5
      %p207 = pnand %p205, %p206
      %p208 = pneg %p207
      // Predicated region
      $region33: #{tpu_custom_call.1} parent=5 // pred_check
        _
      $region34: #{tpu_custom_call.1} parent=5 // pred_check_branch
        %210 = sbr.rel (%p207) target = $region36
      $region35: #{tpu_custom_call.1} parent=5 // pred_region
        %s211 = ssub.s32 %s16, 1
        %s212 = sand.u32 %s29, 1
        %s213 = scalar_lea.sflag [#allocation3], %s212
        %s214 = sand.u32 %s29, 1
        %s215 = smul.addr %s214, 16
        %s216 = scalar_lea.vmem [#allocation2], %s215
        // Predicated region
        $region37: #{tpu_custom_call.1} parent=35 // pred_check
          %p217 = pneg %p42
        $region38: #{tpu_custom_call.1} parent=35 // pred_check_branch
          %219 = sbr.rel (%p217) target = $region40
        $region39: #{tpu_custom_call.1} parent=35 // pred_region
          %220 = dma.done %s213, 256
        $region40: #{tpu_custom_call.1} parent=35 // pred_fallthru
          _
        %s221 = sand.u32 %s55, 1
        %s222 = scalar_lea.sflag [#allocation5], %s221
        %s223 = sand.u32 %s55, 1
        %s224 = smul.addr %s223, 16
        %s225 = scalar_lea.vmem [#allocation4], %s224
        // Predicated region
        $region41: #{tpu_custom_call.1} parent=35 // pred_check
          %p226 = pneg %p68
        $region42: #{tpu_custom_call.1} parent=35 // pred_check_branch
          %228 = sbr.rel (%p226) target = $region44
        $region43: #{tpu_custom_call.1} parent=35 // pred_region
          %229 = dma.done %s222, 256
        $region44: #{tpu_custom_call.1} parent=35 // pred_fallthru
          _
        %s230 = sand.u32 %s29, 1
        %s231 = scalar_lea.sflag [#allocation3], %s230
        %s232 = sand.u32 %s29, 1
        %s233 = smul.addr %s232, 16
        %s234 = scalar_lea.vmem [#allocation2], %s233
        %p235 = pneg %p42
        %p236 = pneg %p39
        %s237 = sand.u32 %s55, 1
        %s238 = scalar_lea.sflag [#allocation5], %s237
        %s239 = sand.u32 %s55, 1
        %s240 = smul.addr %s239, 16
        %s241 = scalar_lea.vmem [#allocation4], %s240
        %p242 = pneg %p68
        %p243 = pneg %p65
        %p244 = pneg %p89
        %p245 = pneg %p86
        %p246 = pneg %p110
        %p247 = pneg %p107
        %p248 = pneg %p136
        %p249 = pneg %p133
        %s250 = smul.u32 2, %s21
        %p251 = scmp.lt.s32.totalorder %s250, 7
        %s252 = scalar_select %p251, %s250, 7
        %s253 = smul.addr %s252, 2
        %s254 = smul.addr %s253, 8
        %s255 = scalar_lea.vmem %s4, %s254
        %s256 = smul.u32 2, %s21
        %s257 = smul.u32 2, %s21
        %s258 = smul.u32 2, %s21
        %p259 = scmp.lt.s32.totalorder %s258, 7
        %s260 = scalar_select %p259, %s258, 7
        %s261 = smul.addr %s260, 2
        %s262 = smul.addr %s261, 8
        %s263 = scalar_lea.vmem %s4, %s262
        %s264 = smul.u32 2, %s21
        %v266 = vld [vmem:[%s2] sm:$0xf]
        %v267 = vld [vmem:[%s2 + $0x4] sm:$0xf]
        %v268 = vld [vmem:[%s3] sm:$0xf]
        %v269 = vld [vmem:[%s3 + $0x4] sm:$0xf]
        %v270 = vld [vmem:[%s3 + $0x8] sm:$0xf]
        %v271 = vld [vmem:[%s3 + $0xc] sm:$0xf]
        %v272 = vld [vmem:[%s216] sm:$0xf]
        %v273 = vld [vmem:[%s216 + $0x4] sm:$0xf]
        %v274 = vld [vmem:[%s225] sm:$0xf]
        %v275 = vld [vmem:[%s225 + $0x4] sm:$0xf]
        %v278 = vunpack.c.l.b16 %v272
        %v279 = vunpack.c.l.b16 %v273
        %v280 = vpack.c.b16 %v279, %v278
        %v283 = vunpack.c.l.b16 %v274
        %v284 = vunpack.c.l.b16 %v275
        %v285 = vpack.c.b16 %v284, %v283
        %vm287 = vcmask 130048
        %v289 = vsel %vm287, %v280, 0
        %291 = vmatprep.subr.bf16.mxu0 0
        %292 = vmatpush1.bf16.msra.mxu0 %v285
        %293 = vmatprep.subr.bf16.mxu0 0
        %294 = vmatpush1.bf16.msra.mxu0 0
        %295 = vmatprep.subr.bf16.mxu0 0
        %296 = vmatpush1.bf16.msra.mxu0 0
        %297 = vmatprep.subr.bf16.mxu0 0
        %298 = vmatpush1.bf16.msra.mxu0 0
        %299 = vmatprep.subr.bf16.mxu0 0
        %300 = vmatpush1.bf16.msra.mxu0 0
        %301 = vmatprep.subr.bf16.mxu0 0
        %302 = vmatpush1.bf16.msra.mxu0 0
        %303 = vmatprep.subr.bf16.mxu0 0
        %304 = vmatpush1.bf16.msra.mxu0 0
        %305 = vmatprep.subr.bf16.mxu0 0
        %306 = vmatpush1.bf16.msra.mxu0 0
        %307 = vmatprep.subr.bf16.mxu0 0
        %308 = vmatpush1.bf16.msra.mxu0 0
        %309 = vmatprep.subr.bf16.mxu0 0
        %310 = vmatpush1.bf16.msra.mxu0 0
        %311 = vmatprep.subr.bf16.mxu0 0
        %312 = vmatpush1.bf16.msra.mxu0 0
        %313 = vmatprep.subr.bf16.mxu0 0
        %314 = vmatpush1.bf16.msra.mxu0 0
        %315 = vmatprep.subr.bf16.mxu0 0
        %316 = vmatpush1.bf16.msra.mxu0 0
        %317 = vmatprep.subr.bf16.mxu0 0
        %318 = vmatpush1.bf16.msra.mxu0 0
        %319 = vmatprep.subr.bf16.mxu0 0
        %320 = vmatpush1.bf16.msra.mxu0 0
        %321 = vmatprep.subr.bf16.mxu0 0
        %322 = vmatpush1.bf16.msra.mxu0 0
        %323 = vmatprep.mubr.bf16.mxu0 0
        %324 = vmatmul.mubr.bf16.gmra.mrb[0].mxu0 %v289
        %v325 = vpop.f32.mrb[0].mxu0
        %v326 = vadd.f32 0.0, %v325
        %v327 = vpop.f32.mrb[0].mxu0
        %v328 = vpop.f32.mrb[0].mxu0
        %v329 = vadd.f32 0.0, %v328
        %v330 = vpop.f32.mrb[0].mxu0
        %331 = vdwg.mxu0
        %v332 = vpack.c.bf16 %v329, %v326
        %v335 = vunpack.c.l.b16 %v266
        %v336 = vunpack.c.l.b16 %v267
        %v337 = vpack.c.b16 %v336, %v335
        %v340 = vsel %vm287, %v332, 0
        %342 = vmatprep.subr.bf16.mxu0 0
        %343 = vmatpush1.bf16.msra.mxu0 %v337
        %344 = vmatprep.subr.bf16.mxu0 0
        %345 = vmatpush1.bf16.msra.mxu0 0
        %346 = vmatprep.subr.bf16.mxu0 0
        %347 = vmatpush1.bf16.msra.mxu0 0
        %348 = vmatprep.subr.bf16.mxu0 0
        %349 = vmatpush1.bf16.msra.mxu0 0
        %350 = vmatprep.subr.bf16.mxu0 0
        %351 = vmatpush1.bf16.msra.mxu0 0
        %352 = vmatprep.subr.bf16.mxu0 0
        %353 = vmatpush1.bf16.msra.mxu0 0
        %354 = vmatprep.subr.bf16.mxu0 0
        %355 = vmatpush1.bf16.msra.mxu0 0
        %356 = vmatprep.subr.bf16.mxu0 0
        %357 = vmatpush1.bf16.msra.mxu0 0
        %358 = vmatprep.subr.bf16.mxu0 0
        %359 = vmatpush1.bf16.msra.mxu0 0
        %360 = vmatprep.subr.bf16.mxu0 0
        %361 = vmatpush1.bf16.msra.mxu0 0
        %362 = vmatprep.subr.bf16.mxu0 0
        %363 = vmatpush1.bf16.msra.mxu0 0
        %364 = vmatprep.subr.bf16.mxu0 0
        %365 = vmatpush1.bf16.msra.mxu0 0
        %366 = vmatprep.subr.bf16.mxu0 0
        %367 = vmatpush1.bf16.msra.mxu0 0
        %368 = vmatprep.subr.bf16.mxu0 0
        %369 = vmatpush1.bf16.msra.mxu0 0
        %370 = vmatprep.subr.bf16.mxu0 0
        %371 = vmatpush1.bf16.msra.mxu0 0
        %372 = vmatprep.subr.bf16.mxu0 0
        %373 = vmatpush1.bf16.msra.mxu0 0
        %374 = vmatprep.mubr.bf16.mxu0 0
        %375 = vmatmul.mubr.bf16.gmra.mrb[0].mxu0 %v340
        %v376 = vpop.f32.mrb[0].mxu0
        %v377 = vadd.f32 0.0, %v376
        %v378 = vpop.f32.mrb[0].mxu0
        %v379 = vpop.f32.mrb[0].mxu0
        %v380 = vadd.f32 0.0, %v379
        %v381 = vpop.f32.mrb[0].mxu0
        %382 = vdwg.mxu0
        %v383 = vmax.f32 %v377, 0.0
        %v384 = vmax.f32 %v380, 0.0
        %v385 = vpack.c.bf16 %v384, %v383
        %v390 = vunpack.c.l.b16 %v268
        %v391 = vunpack.c.l.b16 %v269
        %v392 = vunpack.c.l.b16 %v270
        %v393 = vunpack.c.l.b16 %v271
        %v394 = vpack.c.b16 %v391, %v390
        %v395 = vpack.c.b16 %v393, %v392
        %vm398 = vcmask 261120
        %v400 = vsel %vm398, %v385, 0
        %402 = vmatprep.subr.bf16.mxu0 0
        %403 = vmatpush1.bf16.msra.mxu0 %v394
        %404 = vmatprep.subr.bf16.mxu0 0
        %405 = vmatpush1.bf16.msra.mxu0 %v395
        %406 = vmatprep.subr.bf16.mxu0 0
        %407 = vmatpush1.bf16.msra.mxu0 0
        %408 = vmatprep.subr.bf16.mxu0 0
        %409 = vmatpush1.bf16.msra.mxu0 0
        %410 = vmatprep.subr.bf16.mxu0 0
        %411 = vmatpush1.bf16.msra.mxu0 0
        %412 = vmatprep.subr.bf16.mxu0 0
        %413 = vmatpush1.bf16.msra.mxu0 0
        %414 = vmatprep.subr.bf16.mxu0 0
        %415 = vmatpush1.bf16.msra.mxu0 0
        %416 = vmatprep.subr.bf16.mxu0 0
        %417 = vmatpush1.bf16.msra.mxu0 0
        %418 = vmatprep.subr.bf16.mxu0 0
        %419 = vmatpush1.bf16.msra.mxu0 0
        %420 = vmatprep.subr.bf16.mxu0 0
        %421 = vmatpush1.bf16.msra.mxu0 0
        %422 = vmatprep.subr.bf16.mxu0 0
        %423 = vmatpush1.bf16.msra.mxu0 0
        %424 = vmatprep.subr.bf16.mxu0 0
        %425 = vmatpush1.bf16.msra.mxu0 0
        %426 = vmatprep.subr.bf16.mxu0 0
        %427 = vmatpush1.bf16.msra.mxu0 0
        %428 = vmatprep.subr.bf16.mxu0 0
        %429 = vmatpush1.bf16.msra.mxu0 0
        %430 = vmatprep.subr.bf16.mxu0 0
        %431 = vmatpush1.bf16.msra.mxu0 0
        %432 = vmatprep.subr.bf16.mxu0 0
        %433 = vmatpush1.bf16.msra.mxu0 0
        %434 = vmatprep.mubr.bf16.mxu0 0
        %435 = vmatmul.mubr.bf16.gmra.mrb[0].mxu0 %v400
        %v436 = vpop.f32.mrb[0].mxu0
        %v437 = vadd.f32 0.0, %v436
        %v438 = vpop.f32.mrb[0].mxu0
        %v439 = vpop.f32.mrb[0].mxu0
        %v440 = vadd.f32 0.0, %v439
        %v441 = vpop.f32.mrb[0].mxu0
        %442 = vdwg.mxu0
        %v443 = vpack.c.bf16 %v440, %v437
        %444 = vmatprep.subr.bf16.mxu0 0
        %445 = vmatpush1.bf16.msra.mxu0 %v443
        %446 = vmatprep.subr.bf16.mxu0 0
        %447 = vmatpush1.bf16.msra.mxu0 0
        %448 = vmatprep.subr.bf16.mxu0 0
        %449 = vmatpush1.bf16.msra.mxu0 0
        %450 = vmatprep.subr.bf16.mxu0 0
        %451 = vmatpush1.bf16.msra.mxu0 0
        %452 = vmatprep.subr.bf16.mxu0 0
        %453 = vmatpush1.bf16.msra.mxu0 0
        %454 = vmatprep.subr.bf16.mxu0 0
        %455 = vmatpush1.bf16.msra.mxu0 0
        %456 = vmatprep.subr.bf16.mxu0 0
        %457 = vmatpush1.bf16.msra.mxu0 0
        %458 = vmatprep.subr.bf16.mxu0 0
        %459 = vmatpush1.bf16.msra.mxu0 0
        %460 = vmatprep.subr.bf16.mxu0 0
        %461 = vmatpush1.bf16.msra.mxu0 0
        %462 = vmatprep.subr.bf16.mxu0 0
        %463 = vmatpush1.bf16.msra.mxu0 0
        %464 = vmatprep.subr.bf16.mxu0 0
        %465 = vmatpush1.bf16.msra.mxu0 0
        %466 = vmatprep.subr.bf16.mxu0 0
        %467 = vmatpush1.bf16.msra.mxu0 0
        %468 = vmatprep.subr.bf16.mxu0 0
        %469 = vmatpush1.bf16.msra.mxu0 0
        %470 = vmatprep.subr.bf16.mxu0 0
        %471 = vmatpush1.bf16.msra.mxu0 0
        %472 = vmatprep.subr.bf16.mxu0 0
        %473 = vmatpush1.bf16.msra.mxu0 0
        %474 = vmatprep.subr.bf16.mxu0 0
        %475 = vmatpush1.bf16.msra.mxu0 0
        %476 = vmatprep.mubr.bf16.mxu0 0
        %477 = vmatmul.mubr.bf16.gmra.mrb[0].mxu0 %v289
        %v478 = vpop.f32.mrb[0].mxu0
        %v479 = vadd.f32 0.0, %v478
        %v480 = vpop.f32.mrb[0].mxu0
        %v481 = vpop.f32.mrb[0].mxu0
        %v482 = vadd.f32 0.0, %v481
        %v483 = vpop.f32.mrb[0].mxu0
        %484 = vdwg.mxu0
        %vm485 = vcmask 64512
        %486 = vst.msk [vmem:[%s263] sm:$0xff] %vm485, %v479
        %487 = vst.msk [vmem:[%s263 + $0x8] sm:$0xff] %vm485, %v482
        %s488 = scalar_lea.vmem %s216, 8 [#allocation2]
        %v489 = vld [vmem:[%s488] sm:$0xf]
        %v490 = vld [vmem:[%s488 + $0x4] sm:$0xf]
        %s491 = scalar_lea.vmem %s225, 8 [#allocation4]
        %v492 = vld [vmem:[%s491] sm:$0xf]
        %v493 = vld [vmem:[%s491 + $0x4] sm:$0xf]
        %v496 = vunpack.c.l.b16 %v489
        %v497 = vunpack.c.l.b16 %v490
        %v498 = vpack.c.b16 %v497, %v496
        %v501 = vunpack.c.l.b16 %v492
        %v502 = vunpack.c.l.b16 %v493
        %v503 = vpack.c.b16 %v502, %v501
        %v506 = vsel %vm287, %v498, 0
        %508 = vmatprep.subr.bf16.mxu0 0
        %509 = vmatpush1.bf16.msra.mxu0 %v503
        %510 = vmatprep.subr.bf16.mxu0 0
        %511 = vmatpush1.bf16.msra.mxu0 0
        %512 = vmatprep.subr.bf16.mxu0 0
        %513 = vmatpush1.bf16.msra.mxu0 0
        %514 = vmatprep.subr.bf16.mxu0 0
        %515 = vmatpush1.bf16.msra.mxu0 0
        %516 = vmatprep.subr.bf16.mxu0 0
        %517 = vmatpush1.bf16.msra.mxu0 0
        %518 = vmatprep.subr.bf16.mxu0 0
        %519 = vmatpush1.bf16.msra.mxu0 0
        %520 = vmatprep.subr.bf16.mxu0 0
        %521 = vmatpush1.bf16.msra.mxu0 0
        %522 = vmatprep.subr.bf16.mxu0 0
        %523 = vmatpush1.bf16.msra.mxu0 0
        %524 = vmatprep.subr.bf16.mxu0 0
        %525 = vmatpush1.bf16.msra.mxu0 0
        %526 = vmatprep.subr.bf16.mxu0 0
        %527 = vmatpush1.bf16.msra.mxu0 0
        %528 = vmatprep.subr.bf16.mxu0 0
        %529 = vmatpush1.bf16.msra.mxu0 0
        %530 = vmatprep.subr.bf16.mxu0 0
        %531 = vmatpush1.bf16.msra.mxu0 0
        %532 = vmatprep.subr.bf16.mxu0 0
        %533 = vmatpush1.bf16.msra.mxu0 0
        %534 = vmatprep.subr.bf16.mxu0 0
        %535 = vmatpush1.bf16.msra.mxu0 0
        %536 = vmatprep.subr.bf16.mxu0 0
        %537 = vmatpush1.bf16.msra.mxu0 0
        %538 = vmatprep.subr.bf16.mxu0 0
        %539 = vmatpush1.bf16.msra.mxu0 0
        %540 = vmatprep.mubr.bf16.mxu0 0
        %541 = vmatmul.mubr.bf16.gmra.mrb[0].mxu0 %v506
        %v542 = vpop.f32.mrb[0].mxu0
        %v543 = vadd.f32 0.0, %v542
        %v544 = vpop.f32.mrb[0].mxu0
        %v545 = vpop.f32.mrb[0].mxu0
        %v546 = vadd.f32 0.0, %v545
        %v547 = vpop.f32.mrb[0].mxu0
        %548 = vdwg.mxu0
        %v549 = vpack.c.bf16 %v546, %v543
        %v551 = vsel %vm287, %v549, 0
        %553 = vmatprep.subr.bf16.mxu0 0
        %554 = vmatpush1.bf16.msra.mxu0 %v337
        %555 = vmatprep.subr.bf16.mxu0 0
        %556 = vmatpush1.bf16.msra.mxu0 0
        %557 = vmatprep.subr.bf16.mxu0 0
        %558 = vmatpush1.bf16.msra.mxu0 0
        %559 = vmatprep.subr.bf16.mxu0 0
        %560 = vmatpush1.bf16.msra.mxu0 0
        %561 = vmatprep.subr.bf16.mxu0 0
        %562 = vmatpush1.bf16.msra.mxu0 0
        %563 = vmatprep.subr.bf16.mxu0 0
        %564 = vmatpush1.bf16.msra.mxu0 0
        %565 = vmatprep.subr.bf16.mxu0 0
        %566 = vmatpush1.bf16.msra.mxu0 0
        %567 = vmatprep.subr.bf16.mxu0 0
        %568 = vmatpush1.bf16.msra.mxu0 0
        %569 = vmatprep.subr.bf16.mxu0 0
        %570 = vmatpush1.bf16.msra.mxu0 0
        %571 = vmatprep.subr.bf16.mxu0 0
        %572 = vmatpush1.bf16.msra.mxu0 0
        %573 = vmatprep.subr.bf16.mxu0 0
        %574 = vmatpush1.bf16.msra.mxu0 0
        %575 = vmatprep.subr.bf16.mxu0 0
        %576 = vmatpush1.bf16.msra.mxu0 0
        %577 = vmatprep.subr.bf16.mxu0 0
        %578 = vmatpush1.bf16.msra.mxu0 0
        %579 = vmatprep.subr.bf16.mxu0 0
        %580 = vmatpush1.bf16.msra.mxu0 0
        %581 = vmatprep.subr.bf16.mxu0 0
        %582 = vmatpush1.bf16.msra.mxu0 0
        %583 = vmatprep.subr.bf16.mxu0 0
        %584 = vmatpush1.bf16.msra.mxu0 0
        %585 = vmatprep.mubr.bf16.mxu0 0
        %586 = vmatmul.mubr.bf16.gmra.mrb[0].mxu0 %v551
        %v587 = vpop.f32.mrb[0].mxu0
        %v588 = vadd.f32 0.0, %v587
        %v589 = vpop.f32.mrb[0].mxu0
        %v590 = vpop.f32.mrb[0].mxu0
        %v591 = vadd.f32 0.0, %v590
        %v592 = vpop.f32.mrb[0].mxu0
        %593 = vdwg.mxu0
        %v594 = vmax.f32 %v588, 0.0
        %v595 = vmax.f32 %v591, 0.0
        %v596 = vpack.c.bf16 %v595, %v594
        %v598 = vsel %vm398, %v596, 0
        %600 = vmatprep.subr.bf16.mxu0 0
        %601 = vmatpush1.bf16.msra.mxu0 %v394
        %602 = vmatprep.subr.bf16.mxu0 0
        %603 = vmatpush1.bf16.msra.mxu0 %v395
        %604 = vmatprep.subr.bf16.mxu0 0
        %605 = vmatpush1.bf16.msra.mxu0 0
        %606 = vmatprep.subr.bf16.mxu0 0
        %607 = vmatpush1.bf16.msra.mxu0 0
        %608 = vmatprep.subr.bf16.mxu0 0
        %609 = vmatpush1.bf16.msra.mxu0 0
        %610 = vmatprep.subr.bf16.mxu0 0
        %611 = vmatpush1.bf16.msra.mxu0 0
        %612 = vmatprep.subr.bf16.mxu0 0
        %613 = vmatpush1.bf16.msra.mxu0 0
        %614 = vmatprep.subr.bf16.mxu0 0
        %615 = vmatpush1.bf16.msra.mxu0 0
        %616 = vmatprep.subr.bf16.mxu0 0
        %617 = vmatpush1.bf16.msra.mxu0 0
        %618 = vmatprep.subr.bf16.mxu0 0
        %619 = vmatpush1.bf16.msra.mxu0 0
        %620 = vmatprep.subr.bf16.mxu0 0
        %621 = vmatpush1.bf16.msra.mxu0 0
        %622 = vmatprep.subr.bf16.mxu0 0
        %623 = vmatpush1.bf16.msra.mxu0 0
        %624 = vmatprep.subr.bf16.mxu0 0
        %625 = vmatpush1.bf16.msra.mxu0 0
        %626 = vmatprep.subr.bf16.mxu0 0
        %627 = vmatpush1.bf16.msra.mxu0 0
        %628 = vmatprep.subr.bf16.mxu0 0
        %629 = vmatpush1.bf16.msra.mxu0 0
        %630 = vmatprep.subr.bf16.mxu0 0
        %631 = vmatpush1.bf16.msra.mxu0 0
        %632 = vmatprep.mubr.bf16.mxu0 0
        %633 = vmatmul.mubr.bf16.gmra.mrb[0].mxu0 %v598
        %v634 = vpop.f32.mrb[0].mxu0
        %v635 = vadd.f32 0.0, %v634
        %v636 = vpop.f32.mrb[0].mxu0
        %v637 = vpop.f32.mrb[0].mxu0
        %v638 = vadd.f32 0.0, %v637
        %v639 = vpop.f32.mrb[0].mxu0
        %640 = vdwg.mxu0
        %v641 = vpack.c.bf16 %v638, %v635
        %642 = vmatprep.subr.bf16.mxu0 0
        %643 = vmatpush1.bf16.msra.mxu0 %v641
        %644 = vmatprep.subr.bf16.mxu0 0
        %645 = vmatpush1.bf16.msra.mxu0 0
        %646 = vmatprep.subr.bf16.mxu0 0
        %647 = vmatpush1.bf16.msra.mxu0 0
        %648 = vmatprep.subr.bf16.mxu0 0
        %649 = vmatpush1.bf16.msra.mxu0 0
        %650 = vmatprep.subr.bf16.mxu0 0
        %651 = vmatpush1.bf16.msra.mxu0 0
        %652 = vmatprep.subr.bf16.mxu0 0
        %653 = vmatpush1.bf16.msra.mxu0 0
        %654 = vmatprep.subr.bf16.mxu0 0
        %655 = vmatpush1.bf16.msra.mxu0 0
        %656 = vmatprep.subr.bf16.mxu0 0
        %657 = vmatpush1.bf16.msra.mxu0 0
        %658 = vmatprep.subr.bf16.mxu0 0
        %659 = vmatpush1.bf16.msra.mxu0 0
        %660 = vmatprep.subr.bf16.mxu0 0
        %661 = vmatpush1.bf16.msra.mxu0 0
        %662 = vmatprep.subr.bf16.mxu0 0
        %663 = vmatpush1.bf16.msra.mxu0 0
        %664 = vmatprep.subr.bf16.mxu0 0
        %665 = vmatpush1.bf16.msra.mxu0 0
        %666 = vmatprep.subr.bf16.mxu0 0
        %667 = vmatpush1.bf16.msra.mxu0 0
        %668 = vmatprep.subr.bf16.mxu0 0
        %669 = vmatpush1.bf16.msra.mxu0 0
        %670 = vmatprep.subr.bf16.mxu0 0
        %671 = vmatpush1.bf16.msra.mxu0 0
        %672 = vmatprep.subr.bf16.mxu0 0
        %673 = vmatpush1.bf16.msra.mxu0 0
        %674 = vmatprep.mubr.bf16.mxu0 0
        %675 = vmatmul.mubr.bf16.gmra.mrb[0].mxu0 %v506
        %v676 = vpop.f32.mrb[0].mxu0
        %v677 = vadd.f32 0.0, %v676
        %v678 = vpop.f32.mrb[0].mxu0
        %v679 = vpop.f32.mrb[0].mxu0
        %v680 = vadd.f32 0.0, %v679
        %v681 = vpop.f32.mrb[0].mxu0
        %682 = vdwg.mxu0
        %s683 = scalar_lea.vmem %s263, 16
        %684 = vst.msk [vmem:[%s683] sm:$0xff] %vm485, %v677
        %685 = vst.msk [vmem:[%s683 + $0x8] sm:$0xff] %vm485, %v680
        %s686 = smul.u32 2, %s21
        %p687 = scmp.lt.s32.totalorder %s686, 7
        %s688 = scalar_select %p687, %s686, 7
        %s689 = smul.addr %s688, 2
        %s690 = smul.addr %s689, 8
        %s691 = scalar_lea.vmem %s4, %s690
        // Predicated region
        $region45: #{tpu_custom_call.1} parent=35 // pred_check
          %p692 = pneg %p133
        $region46: #{tpu_custom_call.1} parent=35 // pred_check_branch
          %694 = sbr.rel (%p692) target = $region48
        $region47: #{tpu_custom_call.1} parent=35 // pred_region
          %s695 = smul.u32 2, %s21
        $region48: #{tpu_custom_call.1} parent=35 // pred_fallthru
          _
      $region36: #{tpu_custom_call.1} parent=5 // pred_fallthru
        _
      %p696 = scmp.le.s32.totalorder 2, %s16
      // Predicated region
      $region49: #{tpu_custom_call.1} parent=5 // pred_check
        %p697 = pneg %p696
      $region50: #{tpu_custom_call.1} parent=5 // pred_check_branch
        %699 = sbr.rel (%p697) target = $region52
      $region51: #{tpu_custom_call.1} parent=5 // pred_region
        %s700 = ssub.s32 %s16, 2
        // Predicated region
        $region53: #{tpu_custom_call.1} parent=51 // pred_check
          %p701 = pneg %p139
        $region54: #{tpu_custom_call.1} parent=51 // pred_check_branch
          %703 = sbr.rel (%p701) target = $region56
        $region55: #{tpu_custom_call.1} parent=51 // pred_region
          %s704 = smul.u32 2, %s22
          %p705 = scmp.lt.s32.totalorder %s704, 7
          %s706 = scalar_select %p705, %s704, 7
          %s707 = smul.addr %s706, 2
          %s708 = smul.addr %s707, 8
          %s709 = scalar_lea.vmem %s4, %s708
        $region56: #{tpu_custom_call.1} parent=51 // pred_fallthru
          _
      $region52: #{tpu_custom_call.1} parent=5 // pred_fallthru
        _
    $region6: #{tpu_custom_call.1} parent=1 // loop_footer
      %s20 = sadd.s32 1, %s16
    $region7: #{tpu_custom_call.1} parent=1 // loop_footer_branch
      %15 = sbr.rel target = $region3
    $region8: #{tpu_custom_call.1} parent=1 // loop_exit
      _
    %710 = vsyncpa [#allocation3], 1
    %s711 = scalar_lea.sflag [#allocation3], 1
    %712 = vsyncpa %s711, 1
    %713 = vsyncpa [#allocation5], 1
    %s714 = scalar_lea.sflag [#allocation5], 1
    %715 = vsyncpa %s714, 1

</llo_original>
